<compile_context>
chip_gen: v5e
topology: v5e:2x2
jax: 0.10.0
libtpu: 0.0.40
codegen_flags: <defaults>
</compile_context>

<pallas_src>
import functools

import jax
import jax.numpy as jnp
from jax.experimental import pallas as pl
from jax.experimental.pallas import tpu as pltpu


def lstm_block_kernel(x_ref, wih_ref, whh_ref, b_ref, h_out_ref, h_ref, c_ref,
                      *, seq_len):
    """One grid step == one block of T_BLK time steps.

    x_ref     : (B, T_BLK, E)  embedded tokens for this time block (batch-first)
    wih_ref   : (E, 4H)        fused input->gate weights (gate order i, f, g, o)
    whh_ref   : (H, 4H)        fused hidden->gate weights
    b_ref     : (1, 4H)        combined bias b_ih + b_hh
    h_out_ref : (B, H)         final hidden state (written on last block only)
    h_ref/c_ref : (B, H) f32   persistent VMEM scratch carrying LSTM state
    """
    t = pl.program_id(0)
    B, t_blk, _ = x_ref.shape
    H = whh_ref.shape[0]
    needs_mask = (seq_len % t_blk) != 0   # static: only traced if T was padded

    @pl.when(t == 0)
    def _():
        h_ref[...] = jnp.zeros_like(h_ref)
        c_ref[...] = jnp.zeros_like(c_ref)

    # Time-parallel input projection for the whole block: one lane-dense
    # (B*T_BLK, E) @ (E, 4H) MXU op instead of a tiny matmul per time step.
    x_blk = x_ref[...]                                              # (B, TB, E)
    xz = jnp.dot(x_blk.reshape(B * t_blk, -1), wih_ref[...],
                 preferred_element_type=jnp.float32)                # (B*TB, 4H)
    xz = xz.reshape(B, t_blk, 4 * H)

    whh = whh_ref[...]                 # hoisted: loaded once per block
    bias = b_ref[...]                  # (1, 4H), broadcast in the per-step add

    h = h_ref[...]
    c = c_ref[...]
    # Statically unrolled recurrence over the time block (T_BLK is small).
    for step in range(t_blk):
        z = (xz[:, step, :]
             + jnp.dot(h, whh, preferred_element_type=jnp.float32)
             + bias)                                                # (B, 4H)
        i = jax.nn.sigmoid(z[:, 0 * H:1 * H])
        f = jax.nn.sigmoid(z[:, 1 * H:2 * H])
        g = jnp.tanh(z[:, 2 * H:3 * H])
        o = jax.nn.sigmoid(z[:, 3 * H:4 * H])
        c_new = f * c + i * g
        h_new = o * jnp.tanh(c_new)
        if needs_mask:
            valid = (t * t_blk + step) < seq_len   # ignore zero-padded steps
            h = jnp.where(valid, h_new, h)
            c = jnp.where(valid, c_new, c)
        else:
            h, c = h_new, c_new

    h_ref[...] = h
    c_ref[...] = c

    @pl.when(t == pl.num_programs(0) - 1)
    def _():
        h_out_ref[...] = h


def lstm_classifier_forward(tokens, emb, wih4, whh4, b4, wfc, bfc, *, t_blk=8):
    """tokens: (B, T) int32.  Returns logits (B, O) float32.

    Fused, transposed weight layout (gate order i, f, g, o along the 4H axis):
      wih4: (E, 4H)   whh4: (H, 4H)   b4: (1, 4H)   wfc: (H, O)   bfc: (1, O)
    """
    B, T = tokens.shape
    E = emb.shape[1]
    H = whh4.shape[0]

    # Embedding gather (plain-JAX glue).  Kept batch-first (B, T, E): no
    # host-side time-major transpose; the BlockSpec steps along T instead.
    x_emb = emb[tokens].astype(jnp.float32)

    # Block the time axis; keep the block a multiple of 8 sublanes and pad T
    # with zeros if needed (padded steps are masked inside the kernel).
    num_blocks = pl.cdiv(T, t_blk)
    T_pad = num_blocks * t_blk
    if T_pad != T:
        x_emb = jnp.pad(x_emb, ((0, 0), (0, T_pad - T), (0, 0)))

    kernel = functools.partial(lstm_block_kernel, seq_len=T)

    h_final = pl.pallas_call(
        kernel,
        out_shape=jax.ShapeDtypeStruct((B, H), jnp.float32),
        grid_spec=pltpu.PrefetchScalarGridSpec(
            num_scalar_prefetch=0,
            grid=(num_blocks,),
            in_specs=[
                pl.BlockSpec((B, t_blk, E), lambda t: (0, t, 0)),   # x block
                pl.BlockSpec((E, 4 * H), lambda t: (0, 0)),         # W_ih fused
                pl.BlockSpec((H, 4 * H), lambda t: (0, 0)),         # W_hh fused
                pl.BlockSpec((1, 4 * H), lambda t: (0, 0)),         # bias fused
            ],
            out_specs=pl.BlockSpec((B, H), lambda t: (0, 0)),
            scratch_shapes=[
                pltpu.VMEM((B, H), jnp.float32),   # h state
                pltpu.VMEM((B, H), jnp.float32),   # c state
            ],
        ),
        compiler_params=pltpu.CompilerParams(
            dimension_semantics=("arbitrary",)),   # sequential time recurrence
    )(x_emb, wih4, whh4, b4)

    # One-off final Linear on the final hidden state in plain XLA: keeps
    # W_fc/b_fc out of VMEM for the whole recurrence and avoids a masked
    # O=4 lane store inside the kernel.
    return h_final @ wfc + bfc


def reference_forward(tokens, emb, wih4, whh4, b4, wfc, bfc):
    """Pure-JAX reference matching PyTorch nn.LSTM (i, f, g, o) semantics."""
    x = emb[tokens].astype(jnp.float32)            # (B, T, E)
    B = x.shape[0]
    H = whh4.shape[0]

    def step(carry, xt):
        h, c = carry
        z = xt @ wih4 + h @ whh4 + b4
        i = jax.nn.sigmoid(z[:, 0 * H:1 * H])
        f = jax.nn.sigmoid(z[:, 1 * H:2 * H])
        g = jnp.tanh(z[:, 2 * H:3 * H])
        o = jax.nn.sigmoid(z[:, 3 * H:4 * H])
        c = f * c + i * g
        h = o * jnp.tanh(c)
        return (h, c), None

    init = (jnp.zeros((B, H), jnp.float32), jnp.zeros((B, H), jnp.float32))
    (h, _), _ = jax.lax.scan(step, init, jnp.transpose(x, (1, 0, 2)))
    return h @ wfc + bfc


if __name__ == "__main__":
    # Small, deterministic problem sizes (vocab, emb, hidden, out / batch, seq).
    VOCAB, E, H, O = 50, 16, 32, 4      # 4H = 128 -> lane-dense gate matmuls
    B, T = 2, 8

    key = jax.random.PRNGKey(0)
    k_tok, k_emb, k_wih, k_whh, k_bih, k_bhh, k_wfc, k_bfc = jax.random.split(key, 8)

    tokens = jax.random.randint(k_tok, (B, T), 0, VOCAB, dtype=jnp.int32)

    scale = 0.1
    emb = scale * jax.random.normal(k_emb, (VOCAB, E), jnp.float32)

    # PyTorch stores weight_ih as (4H, E) / weight_hh as (4H, H) with gate
    # order i, f, g, o.  Here the per-gate weights are concatenated along the
    # output axis in the same order, transposed so the kernel computes x @ W.
    wih_g = scale * jax.random.normal(k_wih, (4, E, H), jnp.float32)
    whh_g = scale * jax.random.normal(k_whh, (4, H, H), jnp.float32)
    b_ih = scale * jax.random.normal(k_bih, (4, H), jnp.float32)
    b_hh = scale * jax.random.normal(k_bhh, (4, H), jnp.float32)

    wih4 = jnp.concatenate([wih_g[g] for g in range(4)], axis=1)   # (E, 4H)
    whh4 = jnp.concatenate([whh_g[g] for g in range(4)], axis=1)   # (H, 4H)
    b4 = (b_ih + b_hh).reshape(1, 4 * H)                           # (1, 4H)

    wfc = scale * jax.random.normal(k_wfc, (H, O), jnp.float32)
    bfc = scale * jax.random.normal(k_bfc, (1, O), jnp.float32)

    out = jax.block_until_ready(
        lstm_classifier_forward(tokens, emb, wih4, whh4, b4, wfc, bfc))
    ref = jax.block_until_ready(
        reference_forward(tokens, emb, wih4, whh4, b4, wfc, bfc))

    assert out.shape == (B, O)
    assert jnp.allclose(out, ref, atol=1e-5, rtol=1e-4), (out, ref)
    print("KERNEL_OK")
</pallas_src>

<mosaic_0001>
module attributes {stable_mosaic.version = 11 : i64} {
  func.func @lstm_block_kernel(%arg0: i32, %arg1: memref<2x8x16xf32, #tpu.memory_space<vmem>>, %arg2: memref<16x128xf32, #tpu.memory_space<vmem>>, %arg3: memref<32x128xf32, #tpu.memory_space<vmem>>, %arg4: memref<1x128xf32, #tpu.memory_space<vmem>>, %arg5: memref<2x32xf32, #tpu.memory_space<vmem>>, %arg6: memref<2x32xf32, #tpu.memory_space<vmem>>, %arg7: memref<2x32xf32, #tpu.memory_space<vmem>>) attributes {dimension_semantics = [#tpu.dimension_semantics<arbitrary>], iteration_bounds = array<i64: 1>, scalar_prefetch = 0 : i64, scratch_operands = 2 : i64, tpu.core_type = #tpu.core_type<tc>, window_params = [{transform_indices = @transform_0, window_bounds = array<i64: 2, 8, 16>}, {pipeline_mode = #tpu.pipeline_mode<synchronous>, transform_indices = @transform_1, window_bounds = array<i64: 16, 128>}, {pipeline_mode = #tpu.pipeline_mode<synchronous>, transform_indices = @transform_2, window_bounds = array<i64: 32, 128>}, {pipeline_mode = #tpu.pipeline_mode<synchronous>, transform_indices = @transform_3, window_bounds = array<i64: 1, 128>}, {pipeline_mode = #tpu.pipeline_mode<synchronous>, transform_indices = @transform_4, window_bounds = array<i64: 2, 32>}]} {
    %c0_i32 = arith.constant 0 : i32
    %0 = arith.cmpi eq, %arg0, %c0_i32 : i32
    %1 = arith.extui %0 : i1 to i32
    %c0_i32_0 = arith.constant 0 : i32
    %2 = arith.cmpi ne, %1, %c0_i32_0 : i32
    scf.if %2 {
      %cst_51 = arith.constant 0.000000e+00 : f32
      %265 = vector.broadcast %cst_51 : f32 to vector<2x32xf32>
      %c0_52 = arith.constant 0 : index
      %c0_53 = arith.constant 0 : index
      %266 = vector.load %arg6[%c0_52, %c0_53] : memref<2x32xf32, #tpu.memory_space<vmem>>, vector<2x32xf32>
      tpu.vector_store %arg6[%c0_52, %c0_53], %265 {strides = array<i32>} : memref<2x32xf32, #tpu.memory_space<vmem>>, vector<2x32xf32>,
      %cst_54 = arith.constant 0.000000e+00 : f32
      %267 = vector.broadcast %cst_54 : f32 to vector<2x32xf32>
      %c0_55 = arith.constant 0 : index
      %c0_56 = arith.constant 0 : index
      %268 = vector.load %arg7[%c0_55, %c0_56] : memref<2x32xf32, #tpu.memory_space<vmem>>, vector<2x32xf32>
      tpu.vector_store %arg7[%c0_55, %c0_56], %267 {strides = array<i32>} : memref<2x32xf32, #tpu.memory_space<vmem>>, vector<2x32xf32>,
    } else {
    }
    %c0 = arith.constant 0 : index
    %c0_1 = arith.constant 0 : index
    %c0_2 = arith.constant 0 : index
    %3 = vector.load %arg1[%c0, %c0_1, %c0_2] : memref<2x8x16xf32, #tpu.memory_space<vmem>>, vector<2x8x16xf32>
    %4 = vector.shape_cast %3 : vector<2x8x16xf32> to vector<16x16xf32>
    %c0_3 = arith.constant 0 : index
    %c0_4 = arith.constant 0 : index
    %5 = vector.load %arg2[%c0_3, %c0_4] : memref<16x128xf32, #tpu.memory_space<vmem>>, vector<16x128xf32>
    %cst = arith.constant dense<0.000000e+00> : vector<16x128xf32>
    %6 = tpu.matmul %4, %5, %cst {dimension_numbers = #tpu.dot_dimension_numbers<[1], [0], [0], [1], [0, 0, 1, 1], [], []>} : vector<16x16xf32>, vector<16x128xf32>, vector<16x128xf32> -> vector<16x128xf32>
    %7 = vector.shape_cast %6 : vector<16x128xf32> to vector<2x8x128xf32>
    %c0_5 = arith.constant 0 : index
    %c0_6 = arith.constant 0 : index
    %8 = vector.load %arg3[%c0_5, %c0_6] : memref<32x128xf32, #tpu.memory_space<vmem>>, vector<32x128xf32>
    %c0_7 = arith.constant 0 : index
    %c0_8 = arith.constant 0 : index
    %9 = vector.load %arg4[%c0_7, %c0_8] : memref<1x128xf32, #tpu.memory_space<vmem>>, vector<1x128xf32>
    %c0_9 = arith.constant 0 : index
    %c0_10 = arith.constant 0 : index
    %10 = vector.load %arg6[%c0_9, %c0_10] : memref<2x32xf32, #tpu.memory_space<vmem>>, vector<2x32xf32>
    %c0_11 = arith.constant 0 : index
    %c0_12 = arith.constant 0 : index
    %11 = vector.load %arg7[%c0_11, %c0_12] : memref<2x32xf32, #tpu.memory_space<vmem>>, vector<2x32xf32>
    %12 = vector.extract_strided_slice %7 {offsets = [0, 0, 0], sizes = [2, 1, 128], strides = [1, 1, 1]} : vector<2x8x128xf32> to vector<2x1x128xf32>
    %13 = vector.shape_cast %12 : vector<2x1x128xf32> to vector<2x128xf32>
    %cst_13 = arith.constant dense<0.000000e+00> : vector<2x128xf32>
    %14 = tpu.matmul %10, %8, %cst_13 {dimension_numbers = #tpu.dot_dimension_numbers<[1], [0], [0], [1], [0, 0, 1, 1], [], []>} : vector<2x32xf32>, vector<32x128xf32>, vector<2x128xf32> -> vector<2x128xf32>
    %15 = arith.addf %13, %14 : vector<2x128xf32>
    %16 = vector.broadcast %9 : vector<1x128xf32> to vector<2x128xf32>
    %17 = arith.addf %15, %16 : vector<2x128xf32>
    %18 = vector.extract_strided_slice %17 {offsets = [0, 0], sizes = [2, 32], strides = [1, 1]} : vector<2x128xf32> to vector<2x32xf32>
    %19 = arith.negf %18 : vector<2x32xf32>
    %20 = math.exp %19 : vector<2x32xf32>
    %cst_14 = arith.constant 1.000000e+00 : f32
    %21 = vector.broadcast %cst_14 : f32 to vector<2x32xf32>
    %22 = arith.addf %21, %20 : vector<2x32xf32>
    %23 = arith.divf %21, %22 : vector<2x32xf32>
    %24 = vector.extract_strided_slice %17 {offsets = [0, 32], sizes = [2, 32], strides = [1, 1]} : vector<2x128xf32> to vector<2x32xf32>
    %25 = arith.negf %24 : vector<2x32xf32>
    %26 = math.exp %25 : vector<2x32xf32>
    %cst_15 = arith.constant 1.000000e+00 : f32
    %27 = vector.broadcast %cst_15 : f32 to vector<2x32xf32>
    %28 = arith.addf %27, %26 : vector<2x32xf32>
    %29 = arith.divf %27, %28 : vector<2x32xf32>
    %30 = vector.extract_strided_slice %17 {offsets = [0, 64], sizes = [2, 32], strides = [1, 1]} : vector<2x128xf32> to vector<2x32xf32>
    %31 = math.tanh %30 : vector<2x32xf32>
    %32 = vector.extract_strided_slice %17 {offsets = [0, 96], sizes = [2, 32], strides = [1, 1]} : vector<2x128xf32> to vector<2x32xf32>
    %33 = arith.negf %32 : vector<2x32xf32>
    %34 = math.exp %33 : vector<2x32xf32>
    %cst_16 = arith.constant 1.000000e+00 : f32
    %35 = vector.broadcast %cst_16 : f32 to vector<2x32xf32>
    %36 = arith.addf %35, %34 : vector<2x32xf32>
    %37 = arith.divf %35, %36 : vector<2x32xf32>
    %38 = arith.mulf %29, %11 : vector<2x32xf32>
    %39 = arith.mulf %23, %31 : vector<2x32xf32>
    %40 = arith.addf %38, %39 : vector<2x32xf32>
    %41 = math.tanh %40 : vector<2x32xf32>
    %42 = arith.mulf %37, %41 : vector<2x32xf32>
    %43 = vector.extract_strided_slice %7 {offsets = [0, 1, 0], sizes = [2, 1, 128], strides = [1, 1, 1]} : vector<2x8x128xf32> to vector<2x1x128xf32>
    %44 = vector.shape_cast %43 : vector<2x1x128xf32> to vector<2x128xf32>
    %cst_17 = arith.constant dense<0.000000e+00> : vector<2x128xf32>
    %45 = tpu.matmul %42, %8, %cst_17 {dimension_numbers = #tpu.dot_dimension_numbers<[1], [0], [0], [1], [0, 0, 1, 1], [], []>} : vector<2x32xf32>, vector<32x128xf32>, vector<2x128xf32> -> vector<2x128xf32>
    %46 = arith.addf %44, %45 : vector<2x128xf32>
    %47 = vector.broadcast %9 : vector<1x128xf32> to vector<2x128xf32>
    %48 = arith.addf %46, %47 : vector<2x128xf32>
    %49 = vector.extract_strided_slice %48 {offsets = [0, 0], sizes = [2, 32], strides = [1, 1]} : vector<2x128xf32> to vector<2x32xf32>
    %50 = arith.negf %49 : vector<2x32xf32>
    %51 = math.exp %50 : vector<2x32xf32>
    %cst_18 = arith.constant 1.000000e+00 : f32
    %52 = vector.broadcast %cst_18 : f32 to vector<2x32xf32>
    %53 = arith.addf %52, %51 : vector<2x32xf32>
    %54 = arith.divf %52, %53 : vector<2x32xf32>
    %55 = vector.extract_strided_slice %48 {offsets = [0, 32], sizes = [2, 32], strides = [1, 1]} : vector<2x128xf32> to vector<2x32xf32>
    %56 = arith.negf %55 : vector<2x32xf32>
    %57 = math.exp %56 : vector<2x32xf32>
    %cst_19 = arith.constant 1.000000e+00 : f32
    %58 = vector.broadcast %cst_19 : f32 to vector<2x32xf32>
    %59 = arith.addf %58, %57 : vector<2x32xf32>
    %60 = arith.divf %58, %59 : vector<2x32xf32>
    %61 = vector.extract_strided_slice %48 {offsets = [0, 64], sizes = [2, 32], strides = [1, 1]} : vector<2x128xf32> to vector<2x32xf32>
    %62 = math.tanh %61 : vector<2x32xf32>
    %63 = vector.extract_strided_slice %48 {offsets = [0, 96], sizes = [2, 32], strides = [1, 1]} : vector<2x128xf32> to vector<2x32xf32>
    %64 = arith.negf %63 : vector<2x32xf32>
    %65 = math.exp %64 : vector<2x32xf32>
    %cst_20 = arith.constant 1.000000e+00 : f32
    %66 = vector.broadcast %cst_20 : f32 to vector<2x32xf32>
    %67 = arith.addf %66, %65 : vector<2x32xf32>
    %68 = arith.divf %66, %67 : vector<2x32xf32>
    %69 = arith.mulf %60, %40 : vector<2x32xf32>
    %70 = arith.mulf %54, %62 : vector<2x32xf32>
    %71 = arith.addf %69, %70 : vector<2x32xf32>
    %72 = math.tanh %71 : vector<2x32xf32>
    %73 = arith.mulf %68, %72 : vector<2x32xf32>
    %74 = vector.extract_strided_slice %7 {offsets = [0, 2, 0], sizes = [2, 1, 128], strides = [1, 1, 1]} : vector<2x8x128xf32> to vector<2x1x128xf32>
    %75 = vector.shape_cast %74 : vector<2x1x128xf32> to vector<2x128xf32>
    %cst_21 = arith.constant dense<0.000000e+00> : vector<2x128xf32>
    %76 = tpu.matmul %73, %8, %cst_21 {dimension_numbers = #tpu.dot_dimension_numbers<[1], [0], [0], [1], [0, 0, 1, 1], [], []>} : vector<2x32xf32>, vector<32x128xf32>, vector<2x128xf32> -> vector<2x128xf32>
    %77 = arith.addf %75, %76 : vector<2x128xf32>
    %78 = vector.broadcast %9 : vector<1x128xf32> to vector<2x128xf32>
    %79 = arith.addf %77, %78 : vector<2x128xf32>
    %80 = vector.extract_strided_slice %79 {offsets = [0, 0], sizes = [2, 32], strides = [1, 1]} : vector<2x128xf32> to vector<2x32xf32>
    %81 = arith.negf %80 : vector<2x32xf32>
    %82 = math.exp %81 : vector<2x32xf32>
    %cst_22 = arith.constant 1.000000e+00 : f32
    %83 = vector.broadcast %cst_22 : f32 to vector<2x32xf32>
    %84 = arith.addf %83, %82 : vector<2x32xf32>
    %85 = arith.divf %83, %84 : vector<2x32xf32>
    %86 = vector.extract_strided_slice %79 {offsets = [0, 32], sizes = [2, 32], strides = [1, 1]} : vector<2x128xf32> to vector<2x32xf32>
    %87 = arith.negf %86 : vector<2x32xf32>
    %88 = math.exp %87 : vector<2x32xf32>
    %cst_23 = arith.constant 1.000000e+00 : f32
    %89 = vector.broadcast %cst_23 : f32 to vector<2x32xf32>
    %90 = arith.addf %89, %88 : vector<2x32xf32>
    %91 = arith.divf %89, %90 : vector<2x32xf32>
    %92 = vector.extract_strided_slice %79 {offsets = [0, 64], sizes = [2, 32], strides = [1, 1]} : vector<2x128xf32> to vector<2x32xf32>
    %93 = math.tanh %92 : vector<2x32xf32>
    %94 = vector.extract_strided_slice %79 {offsets = [0, 96], sizes = [2, 32], strides = [1, 1]} : vector<2x128xf32> to vector<2x32xf32>
    %95 = arith.negf %94 : vector<2x32xf32>
    %96 = math.exp %95 : vector<2x32xf32>
    %cst_24 = arith.constant 1.000000e+00 : f32
    %97 = vector.broadcast %cst_24 : f32 to vector<2x32xf32>
    %98 = arith.addf %97, %96 : vector<2x32xf32>
    %99 = arith.divf %97, %98 : vector<2x32xf32>
    %100 = arith.mulf %91, %71 : vector<2x32xf32>
    %101 = arith.mulf %85, %93 : vector<2x32xf32>
    %102 = arith.addf %100, %101 : vector<2x32xf32>
    %103 = math.tanh %102 : vector<2x32xf32>
    %104 = arith.mulf %99, %103 : vector<2x32xf32>
    %105 = vector.extract_strided_slice %7 {offsets = [0, 3, 0], sizes = [2, 1, 128], strides = [1, 1, 1]} : vector<2x8x128xf32> to vector<2x1x128xf32>
    %106 = vector.shape_cast %105 : vector<2x1x128xf32> to vector<2x128xf32>
    %cst_25 = arith.constant dense<0.000000e+00> : vector<2x128xf32>
    %107 = tpu.matmul %104, %8, %cst_25 {dimension_numbers = #tpu.dot_dimension_numbers<[1], [0], [0], [1], [0, 0, 1, 1], [], []>} : vector<2x32xf32>, vector<32x128xf32>, vector<2x128xf32> -> vector<2x128xf32>
    %108 = arith.addf %106, %107 : vector<2x128xf32>
    %109 = vector.broadcast %9 : vector<1x128xf32> to vector<2x128xf32>
    %110 = arith.addf %108, %109 : vector<2x128xf32>
    %111 = vector.extract_strided_slice %110 {offsets = [0, 0], sizes = [2, 32], strides = [1, 1]} : vector<2x128xf32> to vector<2x32xf32>
    %112 = arith.negf %111 : vector<2x32xf32>
    %113 = math.exp %112 : vector<2x32xf32>
    %cst_26 = arith.constant 1.000000e+00 : f32
    %114 = vector.broadcast %cst_26 : f32 to vector<2x32xf32>
    %115 = arith.addf %114, %113 : vector<2x32xf32>
    %116 = arith.divf %114, %115 : vector<2x32xf32>
    %117 = vector.extract_strided_slice %110 {offsets = [0, 32], sizes = [2, 32], strides = [1, 1]} : vector<2x128xf32> to vector<2x32xf32>
    %118 = arith.negf %117 : vector<2x32xf32>
    %119 = math.exp %118 : vector<2x32xf32>
    %cst_27 = arith.constant 1.000000e+00 : f32
    %120 = vector.broadcast %cst_27 : f32 to vector<2x32xf32>
    %121 = arith.addf %120, %119 : vector<2x32xf32>
    %122 = arith.divf %120, %121 : vector<2x32xf32>
    %123 = vector.extract_strided_slice %110 {offsets = [0, 64], sizes = [2, 32], strides = [1, 1]} : vector<2x128xf32> to vector<2x32xf32>
    %124 = math.tanh %123 : vector<2x32xf32>
    %125 = vector.extract_strided_slice %110 {offsets = [0, 96], sizes = [2, 32], strides = [1, 1]} : vector<2x128xf32> to vector<2x32xf32>
    %126 = arith.negf %125 : vector<2x32xf32>
    %127 = math.exp %126 : vector<2x32xf32>
    %cst_28 = arith.constant 1.000000e+00 : f32
    %128 = vector.broadcast %cst_28 : f32 to vector<2x32xf32>
    %129 = arith.addf %128, %127 : vector<2x32xf32>
    %130 = arith.divf %128, %129 : vector<2x32xf32>
    %131 = arith.mulf %122, %102 : vector<2x32xf32>
    %132 = arith.mulf %116, %124 : vector<2x32xf32>
    %133 = arith.addf %131, %132 : vector<2x32xf32>
    %134 = math.tanh %133 : vector<2x32xf32>
    %135 = arith.mulf %130, %134 : vector<2x32xf32>
    %136 = vector.extract_strided_slice %7 {offsets = [0, 4, 0], sizes = [2, 1, 128], strides = [1, 1, 1]} : vector<2x8x128xf32> to vector<2x1x128xf32>
    %137 = vector.shape_cast %136 : vector<2x1x128xf32> to vector<2x128xf32>
    %cst_29 = arith.constant dense<0.000000e+00> : vector<2x128xf32>
    %138 = tpu.matmul %135, %8, %cst_29 {dimension_numbers = #tpu.dot_dimension_numbers<[1], [0], [0], [1], [0, 0, 1, 1], [], []>} : vector<2x32xf32>, vector<32x128xf32>, vector<2x128xf32> -> vector<2x128xf32>
    %139 = arith.addf %137, %138 : vector<2x128xf32>
    %140 = vector.broadcast %9 : vector<1x128xf32> to vector<2x128xf32>
    %141 = arith.addf %139, %140 : vector<2x128xf32>
    %142 = vector.extract_strided_slice %141 {offsets = [0, 0], sizes = [2, 32], strides = [1, 1]} : vector<2x128xf32> to vector<2x32xf32>
    %143 = arith.negf %142 : vector<2x32xf32>
    %144 = math.exp %143 : vector<2x32xf32>
    %cst_30 = arith.constant 1.000000e+00 : f32
    %145 = vector.broadcast %cst_30 : f32 to vector<2x32xf32>
    %146 = arith.addf %145, %144 : vector<2x32xf32>
    %147 = arith.divf %145, %146 : vector<2x32xf32>
    %148 = vector.extract_strided_slice %141 {offsets = [0, 32], sizes = [2, 32], strides = [1, 1]} : vector<2x128xf32> to vector<2x32xf32>
    %149 = arith.negf %148 : vector<2x32xf32>
    %150 = math.exp %149 : vector<2x32xf32>
    %cst_31 = arith.constant 1.000000e+00 : f32
    %151 = vector.broadcast %cst_31 : f32 to vector<2x32xf32>
    %152 = arith.addf %151, %150 : vector<2x32xf32>
    %153 = arith.divf %151, %152 : vector<2x32xf32>
    %154 = vector.extract_strided_slice %141 {offsets = [0, 64], sizes = [2, 32], strides = [1, 1]} : vector<2x128xf32> to vector<2x32xf32>
    %155 = math.tanh %154 : vector<2x32xf32>
    %156 = vector.extract_strided_slice %141 {offsets = [0, 96], sizes = [2, 32], strides = [1, 1]} : vector<2x128xf32> to vector<2x32xf32>
    %157 = arith.negf %156 : vector<2x32xf32>
    %158 = math.exp %157 : vector<2x32xf32>
    %cst_32 = arith.constant 1.000000e+00 : f32
    %159 = vector.broadcast %cst_32 : f32 to vector<2x32xf32>
    %160 = arith.addf %159, %158 : vector<2x32xf32>
    %161 = arith.divf %159, %160 : vector<2x32xf32>
    %162 = arith.mulf %153, %133 : vector<2x32xf32>
    %163 = arith.mulf %147, %155 : vector<2x32xf32>
    %164 = arith.addf %162, %163 : vector<2x32xf32>
    %165 = math.tanh %164 : vector<2x32xf32>
    %166 = arith.mulf %161, %165 : vector<2x32xf32>
    %167 = vector.extract_strided_slice %7 {offsets = [0, 5, 0], sizes = [2, 1, 128], strides = [1, 1, 1]} : vector<2x8x128xf32> to vector<2x1x128xf32>
    %168 = vector.shape_cast %167 : vector<2x1x128xf32> to vector<2x128xf32>
    %cst_33 = arith.constant dense<0.000000e+00> : vector<2x128xf32>
    %169 = tpu.matmul %166, %8, %cst_33 {dimension_numbers = #tpu.dot_dimension_numbers<[1], [0], [0], [1], [0, 0, 1, 1], [], []>} : vector<2x32xf32>, vector<32x128xf32>, vector<2x128xf32> -> vector<2x128xf32>
    %170 = arith.addf %168, %169 : vector<2x128xf32>
    %171 = vector.broadcast %9 : vector<1x128xf32> to vector<2x128xf32>
    %172 = arith.addf %170, %171 : vector<2x128xf32>
    %173 = vector.extract_strided_slice %172 {offsets = [0, 0], sizes = [2, 32], strides = [1, 1]} : vector<2x128xf32> to vector<2x32xf32>
    %174 = arith.negf %173 : vector<2x32xf32>
    %175 = math.exp %174 : vector<2x32xf32>
    %cst_34 = arith.constant 1.000000e+00 : f32
    %176 = vector.broadcast %cst_34 : f32 to vector<2x32xf32>
    %177 = arith.addf %176, %175 : vector<2x32xf32>
    %178 = arith.divf %176, %177 : vector<2x32xf32>
    %179 = vector.extract_strided_slice %172 {offsets = [0, 32], sizes = [2, 32], strides = [1, 1]} : vector<2x128xf32> to vector<2x32xf32>
    %180 = arith.negf %179 : vector<2x32xf32>
    %181 = math.exp %180 : vector<2x32xf32>
    %cst_35 = arith.constant 1.000000e+00 : f32
    %182 = vector.broadcast %cst_35 : f32 to vector<2x32xf32>
    %183 = arith.addf %182, %181 : vector<2x32xf32>
    %184 = arith.divf %182, %183 : vector<2x32xf32>
    %185 = vector.extract_strided_slice %172 {offsets = [0, 64], sizes = [2, 32], strides = [1, 1]} : vector<2x128xf32> to vector<2x32xf32>
    %186 = math.tanh %185 : vector<2x32xf32>
    %187 = vector.extract_strided_slice %172 {offsets = [0, 96], sizes = [2, 32], strides = [1, 1]} : vector<2x128xf32> to vector<2x32xf32>
    %188 = arith.negf %187 : vector<2x32xf32>
    %189 = math.exp %188 : vector<2x32xf32>
    %cst_36 = arith.constant 1.000000e+00 : f32
    %190 = vector.broadcast %cst_36 : f32 to vector<2x32xf32>
    %191 = arith.addf %190, %189 : vector<2x32xf32>
    %192 = arith.divf %190, %191 : vector<2x32xf32>
    %193 = arith.mulf %184, %164 : vector<2x32xf32>
    %194 = arith.mulf %178, %186 : vector<2x32xf32>
    %195 = arith.addf %193, %194 : vector<2x32xf32>
    %196 = math.tanh %195 : vector<2x32xf32>
    %197 = arith.mulf %192, %196 : vector<2x32xf32>
    %198 = vector.extract_strided_slice %7 {offsets = [0, 6, 0], sizes = [2, 1, 128], strides = [1, 1, 1]} : vector<2x8x128xf32> to vector<2x1x128xf32>
    %199 = vector.shape_cast %198 : vector<2x1x128xf32> to vector<2x128xf32>
    %cst_37 = arith.constant dense<0.000000e+00> : vector<2x128xf32>
    %200 = tpu.matmul %197, %8, %cst_37 {dimension_numbers = #tpu.dot_dimension_numbers<[1], [0], [0], [1], [0, 0, 1, 1], [], []>} : vector<2x32xf32>, vector<32x128xf32>, vector<2x128xf32> -> vector<2x128xf32>
    %201 = arith.addf %199, %200 : vector<2x128xf32>
    %202 = vector.broadcast %9 : vector<1x128xf32> to vector<2x128xf32>
    %203 = arith.addf %201, %202 : vector<2x128xf32>
    %204 = vector.extract_strided_slice %203 {offsets = [0, 0], sizes = [2, 32], strides = [1, 1]} : vector<2x128xf32> to vector<2x32xf32>
    %205 = arith.negf %204 : vector<2x32xf32>
    %206 = math.exp %205 : vector<2x32xf32>
    %cst_38 = arith.constant 1.000000e+00 : f32
    %207 = vector.broadcast %cst_38 : f32 to vector<2x32xf32>
    %208 = arith.addf %207, %206 : vector<2x32xf32>
    %209 = arith.divf %207, %208 : vector<2x32xf32>
    %210 = vector.extract_strided_slice %203 {offsets = [0, 32], sizes = [2, 32], strides = [1, 1]} : vector<2x128xf32> to vector<2x32xf32>
    %211 = arith.negf %210 : vector<2x32xf32>
    %212 = math.exp %211 : vector<2x32xf32>
    %cst_39 = arith.constant 1.000000e+00 : f32
    %213 = vector.broadcast %cst_39 : f32 to vector<2x32xf32>
    %214 = arith.addf %213, %212 : vector<2x32xf32>
    %215 = arith.divf %213, %214 : vector<2x32xf32>
    %216 = vector.extract_strided_slice %203 {offsets = [0, 64], sizes = [2, 32], strides = [1, 1]} : vector<2x128xf32> to vector<2x32xf32>
    %217 = math.tanh %216 : vector<2x32xf32>
    %218 = vector.extract_strided_slice %203 {offsets = [0, 96], sizes = [2, 32], strides = [1, 1]} : vector<2x128xf32> to vector<2x32xf32>
    %219 = arith.negf %218 : vector<2x32xf32>
    %220 = math.exp %219 : vector<2x32xf32>
    %cst_40 = arith.constant 1.000000e+00 : f32
    %221 = vector.broadcast %cst_40 : f32 to vector<2x32xf32>
    %222 = arith.addf %221, %220 : vector<2x32xf32>
    %223 = arith.divf %221, %222 : vector<2x32xf32>
    %224 = arith.mulf %215, %195 : vector<2x32xf32>
    %225 = arith.mulf %209, %217 : vector<2x32xf32>
    %226 = arith.addf %224, %225 : vector<2x32xf32>
    %227 = math.tanh %226 : vector<2x32xf32>
    %228 = arith.mulf %223, %227 : vector<2x32xf32>
    %229 = vector.extract_strided_slice %7 {offsets = [0, 7, 0], sizes = [2, 1, 128], strides = [1, 1, 1]} : vector<2x8x128xf32> to vector<2x1x128xf32>
    %230 = vector.shape_cast %229 : vector<2x1x128xf32> to vector<2x128xf32>
    %cst_41 = arith.constant dense<0.000000e+00> : vector<2x128xf32>
    %231 = tpu.matmul %228, %8, %cst_41 {dimension_numbers = #tpu.dot_dimension_numbers<[1], [0], [0], [1], [0, 0, 1, 1], [], []>} : vector<2x32xf32>, vector<32x128xf32>, vector<2x128xf32> -> vector<2x128xf32>
    %232 = arith.addf %230, %231 : vector<2x128xf32>
    %233 = vector.broadcast %9 : vector<1x128xf32> to vector<2x128xf32>
    %234 = arith.addf %232, %233 : vector<2x128xf32>
    %235 = vector.extract_strided_slice %234 {offsets = [0, 0], sizes = [2, 32], strides = [1, 1]} : vector<2x128xf32> to vector<2x32xf32>
    %236 = arith.negf %235 : vector<2x32xf32>
    %237 = math.exp %236 : vector<2x32xf32>
    %cst_42 = arith.constant 1.000000e+00 : f32
    %238 = vector.broadcast %cst_42 : f32 to vector<2x32xf32>
    %239 = arith.addf %238, %237 : vector<2x32xf32>
    %240 = arith.divf %238, %239 : vector<2x32xf32>
    %241 = vector.extract_strided_slice %234 {offsets = [0, 32], sizes = [2, 32], strides = [1, 1]} : vector<2x128xf32> to vector<2x32xf32>
    %242 = arith.negf %241 : vector<2x32xf32>
    %243 = math.exp %242 : vector<2x32xf32>
    %cst_43 = arith.constant 1.000000e+00 : f32
    %244 = vector.broadcast %cst_43 : f32 to vector<2x32xf32>
    %245 = arith.addf %244, %243 : vector<2x32xf32>
    %246 = arith.divf %244, %245 : vector<2x32xf32>
    %247 = vector.extract_strided_slice %234 {offsets = [0, 64], sizes = [2, 32], strides = [1, 1]} : vector<2x128xf32> to vector<2x32xf32>
    %248 = math.tanh %247 : vector<2x32xf32>
    %249 = vector.extract_strided_slice %234 {offsets = [0, 96], sizes = [2, 32], strides = [1, 1]} : vector<2x128xf32> to vector<2x32xf32>
    %250 = arith.negf %249 : vector<2x32xf32>
    %251 = math.exp %250 : vector<2x32xf32>
    %cst_44 = arith.constant 1.000000e+00 : f32
    %252 = vector.broadcast %cst_44 : f32 to vector<2x32xf32>
    %253 = arith.addf %252, %251 : vector<2x32xf32>
    %254 = arith.divf %252, %253 : vector<2x32xf32>
    %255 = arith.mulf %246, %226 : vector<2x32xf32>
    %256 = arith.mulf %240, %248 : vector<2x32xf32>
    %257 = arith.addf %255, %256 : vector<2x32xf32>
    %258 = math.tanh %257 : vector<2x32xf32>
    %259 = arith.mulf %254, %258 : vector<2x32xf32>
    %c0_45 = arith.constant 0 : index
    %c0_46 = arith.constant 0 : index
    %260 = vector.load %arg6[%c0_45, %c0_46] : memref<2x32xf32, #tpu.memory_space<vmem>>, vector<2x32xf32>
    tpu.vector_store %arg6[%c0_45, %c0_46], %259 {strides = array<i32>} : memref<2x32xf32, #tpu.memory_space<vmem>>, vector<2x32xf32>,
    %c0_47 = arith.constant 0 : index
    %c0_48 = arith.constant 0 : index
    %261 = vector.load %arg7[%c0_47, %c0_48] : memref<2x32xf32, #tpu.memory_space<vmem>>, vector<2x32xf32>
    tpu.vector_store %arg7[%c0_47, %c0_48], %257 {strides = array<i32>} : memref<2x32xf32, #tpu.memory_space<vmem>>, vector<2x32xf32>,
    %c0_i32_49 = arith.constant 0 : i32
    %262 = arith.cmpi eq, %arg0, %c0_i32_49 : i32
    %263 = arith.extui %262 : i1 to i32
    %c0_i32_50 = arith.constant 0 : i32
    %264 = arith.cmpi ne, %263, %c0_i32_50 : i32
    scf.if %264 {
      %c0_51 = arith.constant 0 : index
      %c0_52 = arith.constant 0 : index
      %265 = vector.load %arg5[%c0_51, %c0_52] : memref<2x32xf32, #tpu.memory_space<vmem>>, vector<2x32xf32>
      tpu.vector_store %arg5[%c0_51, %c0_52], %259 {strides = array<i32>} : memref<2x32xf32, #tpu.memory_space<vmem>>, vector<2x32xf32>,
    } else {
    }
    return
  }
  func.func @transform_0(%arg0: i32) -> (i32, i32, i32) {
    %c0_i32 = arith.constant 0 : i32
    %c0_i32_0 = arith.constant 0 : i32
    %c0_i32_1 = arith.constant 0 : i32
    return %c0_i32, %arg0, %c0_i32_0 : i32, i32, i32
  }
  func.func @transform_1(%arg0: i32) -> (i32, i32) {
    %c0_i32 = arith.constant 0 : i32
    %c0_i32_0 = arith.constant 0 : i32
    %c0_i32_1 = arith.constant 0 : i32
    return %c0_i32, %c0_i32_0 : i32, i32
  }
  func.func @transform_2(%arg0: i32) -> (i32, i32) {
    %c0_i32 = arith.constant 0 : i32
    %c0_i32_0 = arith.constant 0 : i32
    %c0_i32_1 = arith.constant 0 : i32
    return %c0_i32, %c0_i32_0 : i32, i32
  }
  func.func @transform_3(%arg0: i32) -> (i32, i32) {
    %c0_i32 = arith.constant 0 : i32
    %c0_i32_0 = arith.constant 0 : i32
    %c0_i32_1 = arith.constant 0 : i32
    return %c0_i32, %c0_i32_0 : i32, i32
  }
  func.func @transform_4(%arg0: i32) -> (i32, i32) {
    %c0_i32 = arith.constant 0 : i32
    %c0_i32_0 = arith.constant 0 : i32
    %c0_i32_1 = arith.constant 0 : i32
    return %c0_i32, %c0_i32_0 : i32, i32
  }
}

</mosaic_0001>

<llo_original>
// kernel: tpu_custom_call.1
$region0: #{tpu_custom_call.1}
  #allocation0 [shape = 'u32[]', space=smem, size = 0x4, offset = 0x4, fixed_abs, tag = 'smem constant byte address 0x4 - core index']
  #allocation1 [shape = 'u32[72,128]{1,0:T(1,128)}', space=vmem, size = 0x9000, scoped, tag = 'internal scratch']
  #allocation2 [shape = 'f32[2,32]{1,0:T(2,128)}', space=vmem, size = 0x400, scoped, tag = 'scratch operand']
  #allocation3 [shape = 'f32[2,32]{1,0:T(2,128)}', space=vmem, size = 0x400, scoped, tag = 'scratch operand']
  %s0 = inlined_call_operand.hbm [shape: f32[2,8,16], index: 0, kind: input, shape index: {}]
  %s1 = inlined_call_operand.hbm [shape: f32[16,128], index: 1, kind: input, shape index: {}]
  %s2 = inlined_call_operand.hbm [shape: f32[32,128], index: 2, kind: input, shape index: {}]
  %s3 = inlined_call_operand.vmem [shape: f32[1,128], index: 3, kind: input, shape index: {}]
  %s4 = inlined_call_operand.hbm [shape: f32[2,32], index: 4, kind: output, shape index: {}]
  %s5 = sld [smem:[#allocation0]]
  $region46: #{tpu_custom_call.1} parent=0
    _
  %s7 = ssub.s32 1, %s5
  %s8 = scalar_select 0, %s7, %s5
  $region1: #{tpu_custom_call.1} parent=0
    #allocation4 [shape = 'u8[8192]{0}', space=vmem, size = 0x2000, scoped, tag = 'input window, operand 0, single buffered']
    #allocation5 [shape = 's32[1]{0}', space=sflag, size = 0x4, scoped, tag = 'scoped memory for tpu_custom_call.1']
    #allocation6 [shape = 's32[1]{0}', space=sflag, size = 0x4, scoped, tag = 'scoped memory for tpu_custom_call.1']
    #allocation7 [shape = 'u8[8192]{0}', space=vmem, size = 0x2000, scoped, tag = 'input window, operand 1, single buffered']
    #allocation8 [shape = 's32[1]{0}', space=sflag, size = 0x4, scoped, tag = 'scoped memory for tpu_custom_call.1']
    #allocation9 [shape = 'u8[16384]{0}', space=vmem, size = 0x4000, scoped, tag = 'input window, operand 2, single buffered']
    #allocation10 [shape = 'u8[1024]{0}', space=vmem, size = 0x400, scoped, tag = 'output window, operand 0, single buffered']
    %9 = vsyncpa [#allocation5], 0
    %10 = vsyncpa [#allocation8], 0
    %11 = vsyncpa [#allocation6], 0
    // Predicated region
    $region2: #{tpu_custom_call.1} parent=1 // pred_check
      _
    $region3: #{tpu_custom_call.1} parent=1 // pred_check_branch
      %13 = sbr.rel (0) target = $region5
    $region4: #{tpu_custom_call.1} parent=1 // pred_region
      %15 = vsyncadd [#allocation5], 0
      %s16 = sshll.u32 %s0, 4
      %s17 = int_to_ptr.hbm [resolvable:$true] %s16
      %s18 = sshll.u32 [#allocation4], 4
      %s19 = int_to_ptr.vmem [resolvable:$true] %s18
      %24 = dma.hbm_to_vmem [thread:$0]  %s17, 256, %s19, [#allocation5], 128, 128, 8
    $region5: #{tpu_custom_call.1} parent=1 // pred_fallthru
      _
    // Predicated region
    $region6: #{tpu_custom_call.1} parent=1 // pred_check
      _
    $region7: #{tpu_custom_call.1} parent=1 // pred_check_branch
      %26 = sbr.rel (0) target = $region9
    $region8: #{tpu_custom_call.1} parent=1 // pred_region
      %28 = vsyncadd [#allocation8], 0
      %s29 = sshll.u32 %s1, 4
      %s30 = int_to_ptr.hbm [resolvable:$true] %s29
      %s31 = sshll.u32 [#allocation7], 4
      %s32 = int_to_ptr.vmem [resolvable:$true] %s31
      %37 = dma.hbm_to_vmem [thread:$0]  %s30, 256, %s32, [#allocation8], 128, 128, 8
    $region9: #{tpu_custom_call.1} parent=1 // pred_fallthru
      _
    // Predicated region
    $region10: #{tpu_custom_call.1} parent=1 // pred_check
      _
    $region11: #{tpu_custom_call.1} parent=1 // pred_check_branch
      %39 = sbr.rel (0) target = $region13
    $region12: #{tpu_custom_call.1} parent=1 // pred_region
      %41 = vsyncadd [#allocation8], 0
      %s42 = sshll.u32 %s2, 4
      %s43 = int_to_ptr.hbm [resolvable:$true] %s42
      %s44 = sshll.u32 [#allocation9], 4
      %s45 = int_to_ptr.vmem [resolvable:$true] %s44
      %50 = dma.hbm_to_vmem [thread:$0]  %s43, 512, %s45, [#allocation8], 128, 128, 8
    $region13: #{tpu_custom_call.1} parent=1 // pred_fallthru
      _
    // Predicated region
    $region14: #{tpu_custom_call.1} parent=1 // pred_check
      _
    $region15: #{tpu_custom_call.1} parent=1 // pred_check_branch
      %52 = sbr.rel (0) target = $region17
    $region16: #{tpu_custom_call.1} parent=1 // pred_region
      _
    $region17: #{tpu_custom_call.1} parent=1 // pred_fallthru
      _
    // Predicated region
    $region18: #{tpu_custom_call.1} parent=1 // pred_check
      _
    $region19: #{tpu_custom_call.1} parent=1 // pred_check_branch
      %54 = sbr.rel (0) target = $region21
    $region20: #{tpu_custom_call.1} parent=1 // pred_region
      %56 = dma.done [#allocation5], 256
    $region21: #{tpu_custom_call.1} parent=1 // pred_fallthru
      _
    // Predicated region
    $region22: #{tpu_custom_call.1} parent=1 // pred_check
      _
    $region23: #{tpu_custom_call.1} parent=1 // pred_check_branch
      %58 = sbr.rel (0) target = $region25
    $region24: #{tpu_custom_call.1} parent=1 // pred_region
      %60 = dma.done [#allocation8], 256
    $region25: #{tpu_custom_call.1} parent=1 // pred_fallthru
      _
    // Predicated region
    $region26: #{tpu_custom_call.1} parent=1 // pred_check
      _
    $region27: #{tpu_custom_call.1} parent=1 // pred_check_branch
      %62 = sbr.rel (0) target = $region29
    $region28: #{tpu_custom_call.1} parent=1 // pred_region
      %64 = dma.done [#allocation8], 512
    $region29: #{tpu_custom_call.1} parent=1 // pred_fallthru
      _
    %p65 = scmp.eq.s32.totalorder 0, 0
    // Predicated region
    $region30: #{tpu_custom_call.1} parent=1 // pred_check
      %p66 = pneg %p65
    $region31: #{tpu_custom_call.1} parent=1 // pred_check_branch
      %68 = sbr.rel (%p66) target = $region33
    $region32: #{tpu_custom_call.1} parent=1 // pred_region
      %vm69 = vcmask 254976
      %70 = vst.msk [vmem:[#allocation2] sm:$0x3] %vm69, 0.0
      %71 = vst.msk [vmem:[#allocation3] sm:$0x3] %vm69, 0.0
    $region33: #{tpu_custom_call.1} parent=1 // pred_fallthru
      _
    %v72 = vld [vmem:[#allocation4] sm:$0xff]
    %v73 = vld [vmem:[#allocation4 + $0x8] sm:$0xff]
    %v74 = vld [vmem:[#allocation7] sm:$0xff]
    %v75 = vld [vmem:[#allocation7 + $0x8] sm:$0xff]
    %vm76 = vcmask 130048
    %v78 = vsel %vm76, %v72, 0
    %v81 = vsel %vm76, %v73, 0
    %83 = vmatpush.msra.mxu0 0.0
    %84 = vmatpush.msra.mxu0 0.0
    %85 = vmatpush.msra.mxu0 0.0
    %86 = vmatpush.msra.mxu0 0.0
    %87 = vmatpush.msra.mxu0 0.0
    %88 = vmatpush.msra.mxu0 0.0
    %89 = vmatpush.msra.mxu0 0.0
    %90 = vmatpush.msra.mxu0 0.0
    %91 = vmatpush.msra.mxu0 0.0
    %92 = vmatpush.msra.mxu0 0.0
    %93 = vmatpush.msra.mxu0 0.0
    %94 = vmatpush.msra.mxu0 0.0
    %95 = vmatpush.msra.mxu0 0.0
    %96 = vmatpush.msra.mxu0 0.0
    %97 = vmatpush.msra.mxu0 %v75
    %98 = vmatpush.msra.mxu0 %v74
    %99 = vmatmul.f32.gmra.mxu0 %v78
    %v100 = vpop.f32.mrf.mxu0
    %v101 = vadd.f32 0.0, %v100
    %102 = vmatmul.f32.gmra.mxu0 %v81
    %v103 = vpop.f32.mrf.mxu0
    %v104 = vadd.f32 0.0, %v103
    %105 = vdwg.mxu0
    %v106 = vld [vmem:[#allocation9] sm:$0xff]
    %v107 = vld [vmem:[#allocation9 + $0x8] sm:$0xff]
    %v108 = vld [vmem:[#allocation9 + $0x10] sm:$0xff]
    %v109 = vld [vmem:[#allocation9 + $0x18] sm:$0xff]
    %v110 = vld [vmem:[%s3] sm:$0x1]
    %v111 = vld [vmem:[#allocation2] sm:$0x3]
    %v112 = vld [vmem:[#allocation3] sm:$0x3]
    %vm113 = vcmask 261120
    %v115 = vsel %vm113, %v111, 0
    %117 = vmatpush.msra.mxu0 0.0
    %118 = vmatpush.msra.mxu0 0.0
    %119 = vmatpush.msra.mxu0 0.0
    %120 = vmatpush.msra.mxu0 0.0
    %121 = vmatpush.msra.mxu0 0.0
    %122 = vmatpush.msra.mxu0 0.0
    %123 = vmatpush.msra.mxu0 0.0
    %124 = vmatpush.msra.mxu0 0.0
    %125 = vmatpush.msra.mxu0 0.0
    %126 = vmatpush.msra.mxu0 0.0
    %127 = vmatpush.msra.mxu0 0.0
    %128 = vmatpush.msra.mxu0 0.0
    %129 = vmatpush.msra.mxu0 %v109
    %130 = vmatpush.msra.mxu0 %v108
    %131 = vmatpush.msra.mxu0 %v107
    %132 = vmatpush.msra.mxu0 %v106
    %133 = vmatmul.f32.gmra.mxu0 %v115
    %v134 = vpop.f32.mrf.mxu0
    %v135 = vadd.f32 0.0, %v134
    %136 = vdwg.mxu0
    %v138 = vrot.slane %v135, 1
    %v141 = vadd.f32 %v101, %v135
    %v142 = vadd.f32 %v104, %v138
    %v144 = vperm.slane %v110, 0
    %v146 = vadd.f32 %v141, %v144
    %v147 = vadd.f32 %v142, %v144
    %v148 = vxor.u32 %v146, 2147483648
    %v149 = vxor.u32 %v147, 2147483648
    %v150 = vmul.f32 %v148, 1.442695
    %v151 = vpow.pop %v150
    %v152 = vmul.f32 %v149, 1.442695
    %v153 = vpow.pop %v152
    %v154 = vadd.f32 %v151, 1.0
    %v155 = vadd.f32 %v153, 1.0
    %v156 = vrcp.pop %v154
    %v157 = vmul.f32 %v154, %v156
    %v158 = vsub.f32 1.0, %v157
    %v159 = vmul.f32 %v156, %v158
    %v160 = vadd.f32 %v156, %v159
    %vm161 = vweird.f32 %v154
    %vm162 = vweird.f32 %v156
    %vm163 = vmor %vm161, %vm162
    %v164 = vsel %vm163, %v156, %v160
    %v165 = vand.u32 2147483647, %v154
    %vm166 = vcmp.eq.f32.partialorder %v165, 8.507059e+37
    %v167 = vand.u32 %v154, 2147483648
    %v168 = vor.u32 1.1754944e-38, %v167
    %v169 = vsel %vm166, %v168, %v164
    %v170 = vmul.f32 1.0, %v169
    %v171 = vrcp.pop %v155
    %v172 = vmul.f32 %v155, %v171
    %v173 = vsub.f32 1.0, %v172
    %v174 = vmul.f32 %v171, %v173
    %v175 = vadd.f32 %v171, %v174
    %vm176 = vweird.f32 %v155
    %vm177 = vweird.f32 %v171
    %vm178 = vmor %vm176, %vm177
    %v179 = vsel %vm178, %v171, %v175
    %v180 = vand.u32 2147483647, %v155
    %vm181 = vcmp.eq.f32.partialorder %v180, 8.507059e+37
    %v182 = vand.u32 %v155, 2147483648
    %v183 = vor.u32 1.1754944e-38, %v182
    %v184 = vsel %vm181, %v183, %v179
    %v185 = vmul.f32 1.0, %v184
    %v186 = vtanh.pop %v146
    %v187 = vtanh.pop %v147
    %v189 = vrot.slane %v112, 1
    %190 = vrot.lane.b32.xlu0 %v112, 32
    %v191 = vpop.permute.xlu0 %190
    %192 = vrot.lane.b32.xlu0 %v189, 32
    %v193 = vpop.permute.xlu0 %192
    %v196 = vmul.f32 %v170, %v191
    %v197 = vmul.f32 %v185, %v193
    %200 = vrot.lane.b32.xlu0 %v186, 64
    %v201 = vpop.permute.xlu0 %200
    %202 = vrot.lane.b32.xlu0 %v187, 64
    %v203 = vpop.permute.xlu0 %202
    %v206 = vmul.f32 %v170, %v201
    %v207 = vmul.f32 %v185, %v203
    %210 = vrot.lane.b32.xlu0 %v206, 32
    %v211 = vpop.permute.xlu0 %210
    %212 = vrot.lane.b32.xlu0 %v207, 32
    %v213 = vpop.permute.xlu0 %212
    %v216 = vadd.f32 %v196, %v211
    %v217 = vadd.f32 %v197, %v213
    %v218 = vtanh.pop %v216
    %v219 = vtanh.pop %v217
    %222 = vrot.lane.b32.xlu0 %v218, 64
    %v223 = vpop.permute.xlu0 %222
    %224 = vrot.lane.b32.xlu0 %v219, 64
    %v225 = vpop.permute.xlu0 %224
    %v228 = vmul.f32 %v170, %v223
    %v229 = vmul.f32 %v185, %v225
    %v232 = vrot.slane %v229, 7
    %vm233 = vcmask 1041409
    %v234 = vsel %vm233, %v232, %v228
    %235 = vrot.lane.b32.xlu0 %v234, 32
    %v236 = vpop.permute.xlu0 %235
    %v237 = vsel %vm113, %v236, 0
    %239 = vmatpush.msra.mxu0 0.0
    %240 = vmatpush.msra.mxu0 0.0
    %241 = vmatpush.msra.mxu0 0.0
    %242 = vmatpush.msra.mxu0 0.0
    %243 = vmatpush.msra.mxu0 0.0
    %244 = vmatpush.msra.mxu0 0.0
    %245 = vmatpush.msra.mxu0 0.0
    %246 = vmatpush.msra.mxu0 0.0
    %247 = vmatpush.msra.mxu0 0.0
    %248 = vmatpush.msra.mxu0 0.0
    %249 = vmatpush.msra.mxu0 0.0
    %250 = vmatpush.msra.mxu0 0.0
    %251 = vmatpush.msra.mxu0 %v109
    %252 = vmatpush.msra.mxu0 %v108
    %253 = vmatpush.msra.mxu0 %v107
    %254 = vmatpush.msra.mxu0 %v106
    %255 = vmatmul.f32.gmra.mxu0 %v237
    %v256 = vpop.f32.mrf.mxu0
    %v257 = vadd.f32 0.0, %v256
    %258 = vdwg.mxu0
    %v260 = vrot.slane %v257, 7
    %v263 = vadd.f32 %v101, %v260
    %v264 = vadd.f32 %v104, %v257
    %v265 = vadd.f32 %v263, %v144
    %v266 = vadd.f32 %v264, %v144
    %v267 = vxor.u32 %v265, 2147483648
    %v268 = vxor.u32 %v266, 2147483648
    %v269 = vmul.f32 %v267, 1.442695
    %v270 = vpow.pop %v269
    %v271 = vmul.f32 %v268, 1.442695
    %v272 = vpow.pop %v271
    %v273 = vadd.f32 %v270, 1.0
    %v274 = vadd.f32 %v272, 1.0
    %v275 = vrcp.pop %v273
    %v276 = vmul.f32 %v273, %v275
    %v277 = vsub.f32 1.0, %v276
    %v278 = vmul.f32 %v275, %v277
    %v279 = vadd.f32 %v275, %v278
    %vm280 = vweird.f32 %v273
    %vm281 = vweird.f32 %v275
    %vm282 = vmor %vm280, %vm281
    %v283 = vsel %vm282, %v275, %v279
    %v284 = vand.u32 2147483647, %v273
    %vm285 = vcmp.eq.f32.partialorder %v284, 8.507059e+37
    %v286 = vand.u32 %v273, 2147483648
    %v287 = vor.u32 1.1754944e-38, %v286
    %v288 = vsel %vm285, %v287, %v283
    %v289 = vmul.f32 1.0, %v288
    %v290 = vrcp.pop %v274
    %v291 = vmul.f32 %v274, %v290
    %v292 = vsub.f32 1.0, %v291
    %v293 = vmul.f32 %v290, %v292
    %v294 = vadd.f32 %v290, %v293
    %vm295 = vweird.f32 %v274
    %vm296 = vweird.f32 %v290
    %vm297 = vmor %vm295, %vm296
    %v298 = vsel %vm297, %v290, %v294
    %v299 = vand.u32 2147483647, %v274
    %vm300 = vcmp.eq.f32.partialorder %v299, 8.507059e+37
    %v301 = vand.u32 %v274, 2147483648
    %v302 = vor.u32 1.1754944e-38, %v301
    %v303 = vsel %vm300, %v302, %v298
    %v304 = vmul.f32 1.0, %v303
    %v305 = vtanh.pop %v265
    %v306 = vtanh.pop %v266
    %v309 = vrot.slane %v216, 7
    %v310 = vrot.slane %v217, 7
    %v313 = vmul.f32 %v289, %v309
    %v314 = vmul.f32 %v304, %v310
    %317 = vrot.lane.b32.xlu0 %v305, 64
    %v318 = vpop.permute.xlu0 %317
    %319 = vrot.lane.b32.xlu0 %v306, 64
    %v320 = vpop.permute.xlu0 %319
    %v323 = vmul.f32 %v289, %v318
    %v324 = vmul.f32 %v304, %v320
    %327 = vrot.lane.b32.xlu0 %v323, 32
    %v328 = vpop.permute.xlu0 %327
    %329 = vrot.lane.b32.xlu0 %v324, 32
    %v330 = vpop.permute.xlu0 %329
    %v333 = vadd.f32 %v313, %v328
    %v334 = vadd.f32 %v314, %v330
    %v335 = vtanh.pop %v333
    %v336 = vtanh.pop %v334
    %339 = vrot.lane.b32.xlu0 %v335, 64
    %v340 = vpop.permute.xlu0 %339
    %341 = vrot.lane.b32.xlu0 %v336, 64
    %v342 = vpop.permute.xlu0 %341
    %v345 = vmul.f32 %v289, %v340
    %v346 = vmul.f32 %v304, %v342
    %v349 = vrot.slane %v345, 1
    %v350 = vsel %vm233, %v346, %v349
    %351 = vrot.lane.b32.xlu0 %v350, 32
    %v352 = vpop.permute.xlu0 %351
    %v353 = vsel %vm113, %v352, 0
    %355 = vmatpush.msra.mxu0 0.0
    %356 = vmatpush.msra.mxu0 0.0
    %357 = vmatpush.msra.mxu0 0.0
    %358 = vmatpush.msra.mxu0 0.0
    %359 = vmatpush.msra.mxu0 0.0
    %360 = vmatpush.msra.mxu0 0.0
    %361 = vmatpush.msra.mxu0 0.0
    %362 = vmatpush.msra.mxu0 0.0
    %363 = vmatpush.msra.mxu0 0.0
    %364 = vmatpush.msra.mxu0 0.0
    %365 = vmatpush.msra.mxu0 0.0
    %366 = vmatpush.msra.mxu0 0.0
    %367 = vmatpush.msra.mxu0 %v109
    %368 = vmatpush.msra.mxu0 %v108
    %369 = vmatpush.msra.mxu0 %v107
    %370 = vmatpush.msra.mxu0 %v106
    %371 = vmatmul.f32.gmra.mxu0 %v353
    %v372 = vpop.f32.mrf.mxu0
    %v373 = vadd.f32 0.0, %v372
    %374 = vdwg.mxu0
    %v376 = vrot.slane %v373, 6
    %v377 = vrot.slane %v373, 7
    %v380 = vadd.f32 %v101, %v376
    %v381 = vadd.f32 %v104, %v377
    %v382 = vadd.f32 %v380, %v144
    %v383 = vadd.f32 %v381, %v144
    %v384 = vxor.u32 %v382, 2147483648
    %v385 = vxor.u32 %v383, 2147483648
    %v386 = vmul.f32 %v384, 1.442695
    %v387 = vpow.pop %v386
    %v388 = vmul.f32 %v385, 1.442695
    %v389 = vpow.pop %v388
    %v390 = vadd.f32 %v387, 1.0
    %v391 = vadd.f32 %v389, 1.0
    %v392 = vrcp.pop %v390
    %v393 = vmul.f32 %v390, %v392
    %v394 = vsub.f32 1.0, %v393
    %v395 = vmul.f32 %v392, %v394
    %v396 = vadd.f32 %v392, %v395
    %vm397 = vweird.f32 %v390
    %vm398 = vweird.f32 %v392
    %vm399 = vmor %vm397, %vm398
    %v400 = vsel %vm399, %v392, %v396
    %v401 = vand.u32 2147483647, %v390
    %vm402 = vcmp.eq.f32.partialorder %v401, 8.507059e+37
    %v403 = vand.u32 %v390, 2147483648
    %v404 = vor.u32 1.1754944e-38, %v403
    %v405 = vsel %vm402, %v404, %v400
    %v406 = vmul.f32 1.0, %v405
    %v407 = vrcp.pop %v391
    %v408 = vmul.f32 %v391, %v407
    %v409 = vsub.f32 1.0, %v408
    %v410 = vmul.f32 %v407, %v409
    %v411 = vadd.f32 %v407, %v410
    %vm412 = vweird.f32 %v391
    %vm413 = vweird.f32 %v407
    %vm414 = vmor %vm412, %vm413
    %v415 = vsel %vm414, %v407, %v411
    %v416 = vand.u32 2147483647, %v391
    %vm417 = vcmp.eq.f32.partialorder %v416, 8.507059e+37
    %v418 = vand.u32 %v391, 2147483648
    %v419 = vor.u32 1.1754944e-38, %v418
    %v420 = vsel %vm417, %v419, %v415
    %v421 = vmul.f32 1.0, %v420
    %v422 = vtanh.pop %v382
    %v423 = vtanh.pop %v383
    %v426 = vrot.slane %v333, 7
    %v427 = vrot.slane %v334, 7
    %v430 = vmul.f32 %v406, %v426
    %v431 = vmul.f32 %v421, %v427
    %434 = vrot.lane.b32.xlu0 %v422, 64
    %v435 = vpop.permute.xlu0 %434
    %436 = vrot.lane.b32.xlu0 %v423, 64
    %v437 = vpop.permute.xlu0 %436
    %v440 = vmul.f32 %v406, %v435
    %v441 = vmul.f32 %v421, %v437
    %444 = vrot.lane.b32.xlu0 %v440, 32
    %v445 = vpop.permute.xlu0 %444
    %446 = vrot.lane.b32.xlu0 %v441, 32
    %v447 = vpop.permute.xlu0 %446
    %v450 = vadd.f32 %v430, %v445
    %v451 = vadd.f32 %v431, %v447
    %v452 = vtanh.pop %v450
    %v453 = vtanh.pop %v451
    %456 = vrot.lane.b32.xlu0 %v452, 64
    %v457 = vpop.permute.xlu0 %456
    %458 = vrot.lane.b32.xlu0 %v453, 64
    %v459 = vpop.permute.xlu0 %458
    %v462 = vmul.f32 %v406, %v457
    %v463 = vmul.f32 %v421, %v459
    %v466 = vrot.slane %v462, 2
    %v467 = vrot.slane %v463, 1
    %v468 = vsel %vm233, %v467, %v466
    %469 = vrot.lane.b32.xlu0 %v468, 32
    %v470 = vpop.permute.xlu0 %469
    %v471 = vsel %vm113, %v470, 0
    %473 = vmatpush.msra.mxu0 0.0
    %474 = vmatpush.msra.mxu0 0.0
    %475 = vmatpush.msra.mxu0 0.0
    %476 = vmatpush.msra.mxu0 0.0
    %477 = vmatpush.msra.mxu0 0.0
    %478 = vmatpush.msra.mxu0 0.0
    %479 = vmatpush.msra.mxu0 0.0
    %480 = vmatpush.msra.mxu0 0.0
    %481 = vmatpush.msra.mxu0 0.0
    %482 = vmatpush.msra.mxu0 0.0
    %483 = vmatpush.msra.mxu0 0.0
    %484 = vmatpush.msra.mxu0 0.0
    %485 = vmatpush.msra.mxu0 %v109
    %486 = vmatpush.msra.mxu0 %v108
    %487 = vmatpush.msra.mxu0 %v107
    %488 = vmatpush.msra.mxu0 %v106
    %489 = vmatmul.f32.gmra.mxu0 %v471
    %v490 = vpop.f32.mrf.mxu0
    %v491 = vadd.f32 0.0, %v490
    %492 = vdwg.mxu0
    %v494 = vrot.slane %v491, 5
    %v495 = vrot.slane %v491, 6
    %v498 = vadd.f32 %v101, %v494
    %v499 = vadd.f32 %v104, %v495
    %v500 = vadd.f32 %v498, %v144
    %v501 = vadd.f32 %v499, %v144
    %v502 = vxor.u32 %v500, 2147483648
    %v503 = vxor.u32 %v501, 2147483648
    %v504 = vmul.f32 %v502, 1.442695
    %v505 = vpow.pop %v504
    %v506 = vmul.f32 %v503, 1.442695
    %v507 = vpow.pop %v506
    %v508 = vadd.f32 %v505, 1.0
    %v509 = vadd.f32 %v507, 1.0
    %v510 = vrcp.pop %v508
    %v511 = vmul.f32 %v508, %v510
    %v512 = vsub.f32 1.0, %v511
    %v513 = vmul.f32 %v510, %v512
    %v514 = vadd.f32 %v510, %v513
    %vm515 = vweird.f32 %v508
    %vm516 = vweird.f32 %v510
    %vm517 = vmor %vm515, %vm516
    %v518 = vsel %vm517, %v510, %v514
    %v519 = vand.u32 2147483647, %v508
    %vm520 = vcmp.eq.f32.partialorder %v519, 8.507059e+37
    %v521 = vand.u32 %v508, 2147483648
    %v522 = vor.u32 1.1754944e-38, %v521
    %v523 = vsel %vm520, %v522, %v518
    %v524 = vmul.f32 1.0, %v523
    %v525 = vrcp.pop %v509
    %v526 = vmul.f32 %v509, %v525
    %v527 = vsub.f32 1.0, %v526
    %v528 = vmul.f32 %v525, %v527
    %v529 = vadd.f32 %v525, %v528
    %vm530 = vweird.f32 %v509
    %vm531 = vweird.f32 %v525
    %vm532 = vmor %vm530, %vm531
    %v533 = vsel %vm532, %v525, %v529
    %v534 = vand.u32 2147483647, %v509
    %vm535 = vcmp.eq.f32.partialorder %v534, 8.507059e+37
    %v536 = vand.u32 %v509, 2147483648
    %v537 = vor.u32 1.1754944e-38, %v536
    %v538 = vsel %vm535, %v537, %v533
    %v539 = vmul.f32 1.0, %v538
    %v540 = vtanh.pop %v500
    %v541 = vtanh.pop %v501
    %v544 = vrot.slane %v450, 7
    %v545 = vrot.slane %v451, 7
    %v548 = vmul.f32 %v524, %v544
    %v549 = vmul.f32 %v539, %v545
    %552 = vrot.lane.b32.xlu0 %v540, 64
    %v553 = vpop.permute.xlu0 %552
    %554 = vrot.lane.b32.xlu0 %v541, 64
    %v555 = vpop.permute.xlu0 %554
    %v558 = vmul.f32 %v524, %v553
    %v559 = vmul.f32 %v539, %v555
    %562 = vrot.lane.b32.xlu0 %v558, 32
    %v563 = vpop.permute.xlu0 %562
    %564 = vrot.lane.b32.xlu0 %v559, 32
    %v565 = vpop.permute.xlu0 %564
    %v568 = vadd.f32 %v548, %v563
    %v569 = vadd.f32 %v549, %v565
    %v570 = vtanh.pop %v568
    %v571 = vtanh.pop %v569
    %574 = vrot.lane.b32.xlu0 %v570, 64
    %v575 = vpop.permute.xlu0 %574
    %576 = vrot.lane.b32.xlu0 %v571, 64
    %v577 = vpop.permute.xlu0 %576
    %v580 = vmul.f32 %v524, %v575
    %v581 = vmul.f32 %v539, %v577
    %v584 = vrot.slane %v580, 3
    %v585 = vrot.slane %v581, 2
    %v586 = vsel %vm233, %v585, %v584
    %587 = vrot.lane.b32.xlu0 %v586, 32
    %v588 = vpop.permute.xlu0 %587
    %v589 = vsel %vm113, %v588, 0
    %591 = vmatpush.msra.mxu0 0.0
    %592 = vmatpush.msra.mxu0 0.0
    %593 = vmatpush.msra.mxu0 0.0
    %594 = vmatpush.msra.mxu0 0.0
    %595 = vmatpush.msra.mxu0 0.0
    %596 = vmatpush.msra.mxu0 0.0
    %597 = vmatpush.msra.mxu0 0.0
    %598 = vmatpush.msra.mxu0 0.0
    %599 = vmatpush.msra.mxu0 0.0
    %600 = vmatpush.msra.mxu0 0.0
    %601 = vmatpush.msra.mxu0 0.0
    %602 = vmatpush.msra.mxu0 0.0
    %603 = vmatpush.msra.mxu0 %v109
    %604 = vmatpush.msra.mxu0 %v108
    %605 = vmatpush.msra.mxu0 %v107
    %606 = vmatpush.msra.mxu0 %v106
    %607 = vmatmul.f32.gmra.mxu0 %v589
    %v608 = vpop.f32.mrf.mxu0
    %v609 = vadd.f32 0.0, %v608
    %610 = vdwg.mxu0
    %v612 = vrot.slane %v609, 4
    %v613 = vrot.slane %v609, 5
    %v616 = vadd.f32 %v101, %v612
    %v617 = vadd.f32 %v104, %v613
    %v618 = vadd.f32 %v616, %v144
    %v619 = vadd.f32 %v617, %v144
    %v620 = vxor.u32 %v618, 2147483648
    %v621 = vxor.u32 %v619, 2147483648
    %v622 = vmul.f32 %v620, 1.442695
    %v623 = vpow.pop %v622
    %v624 = vmul.f32 %v621, 1.442695
    %v625 = vpow.pop %v624
    %v626 = vadd.f32 %v623, 1.0
    %v627 = vadd.f32 %v625, 1.0
    %v628 = vrcp.pop %v626
    %v629 = vmul.f32 %v626, %v628
    %v630 = vsub.f32 1.0, %v629
    %v631 = vmul.f32 %v628, %v630
    %v632 = vadd.f32 %v628, %v631
    %vm633 = vweird.f32 %v626
    %vm634 = vweird.f32 %v628
    %vm635 = vmor %vm633, %vm634
    %v636 = vsel %vm635, %v628, %v632
    %v637 = vand.u32 2147483647, %v626
    %vm638 = vcmp.eq.f32.partialorder %v637, 8.507059e+37
    %v639 = vand.u32 %v626, 2147483648
    %v640 = vor.u32 1.1754944e-38, %v639
    %v641 = vsel %vm638, %v640, %v636
    %v642 = vmul.f32 1.0, %v641
    %v643 = vrcp.pop %v627
    %v644 = vmul.f32 %v627, %v643
    %v645 = vsub.f32 1.0, %v644
    %v646 = vmul.f32 %v643, %v645
    %v647 = vadd.f32 %v643, %v646
    %vm648 = vweird.f32 %v627
    %vm649 = vweird.f32 %v643
    %vm650 = vmor %vm648, %vm649
    %v651 = vsel %vm650, %v643, %v647
    %v652 = vand.u32 2147483647, %v627
    %vm653 = vcmp.eq.f32.partialorder %v652, 8.507059e+37
    %v654 = vand.u32 %v627, 2147483648
    %v655 = vor.u32 1.1754944e-38, %v654
    %v656 = vsel %vm653, %v655, %v651
    %v657 = vmul.f32 1.0, %v656
    %v658 = vtanh.pop %v618
    %v659 = vtanh.pop %v619
    %v662 = vrot.slane %v568, 7
    %v663 = vrot.slane %v569, 7
    %v666 = vmul.f32 %v642, %v662
    %v667 = vmul.f32 %v657, %v663
    %670 = vrot.lane.b32.xlu0 %v658, 64
    %v671 = vpop.permute.xlu0 %670
    %672 = vrot.lane.b32.xlu0 %v659, 64
    %v673 = vpop.permute.xlu0 %672
    %v676 = vmul.f32 %v642, %v671
    %v677 = vmul.f32 %v657, %v673
    %680 = vrot.lane.b32.xlu0 %v676, 32
    %v681 = vpop.permute.xlu0 %680
    %682 = vrot.lane.b32.xlu0 %v677, 32
    %v683 = vpop.permute.xlu0 %682
    %v686 = vadd.f32 %v666, %v681
    %v687 = vadd.f32 %v667, %v683
    %v688 = vtanh.pop %v686
    %v689 = vtanh.pop %v687
    %692 = vrot.lane.b32.xlu0 %v688, 64
    %v693 = vpop.permute.xlu0 %692
    %694 = vrot.lane.b32.xlu0 %v689, 64
    %v695 = vpop.permute.xlu0 %694
    %v698 = vmul.f32 %v642, %v693
    %v699 = vmul.f32 %v657, %v695
    %v702 = vrot.slane %v698, 4
    %v703 = vrot.slane %v699, 3
    %v704 = vsel %vm233, %v703, %v702
    %705 = vrot.lane.b32.xlu0 %v704, 32
    %v706 = vpop.permute.xlu0 %705
    %v707 = vsel %vm113, %v706, 0
    %709 = vmatpush.msra.mxu0 0.0
    %710 = vmatpush.msra.mxu0 0.0
    %711 = vmatpush.msra.mxu0 0.0
    %712 = vmatpush.msra.mxu0 0.0
    %713 = vmatpush.msra.mxu0 0.0
    %714 = vmatpush.msra.mxu0 0.0
    %715 = vmatpush.msra.mxu0 0.0
    %716 = vmatpush.msra.mxu0 0.0
    %717 = vmatpush.msra.mxu0 0.0
    %718 = vmatpush.msra.mxu0 0.0
    %719 = vmatpush.msra.mxu0 0.0
    %720 = vmatpush.msra.mxu0 0.0
    %721 = vmatpush.msra.mxu0 %v109
    %722 = vmatpush.msra.mxu0 %v108
    %723 = vmatpush.msra.mxu0 %v107
    %724 = vmatpush.msra.mxu0 %v106
    %725 = vmatmul.f32.gmra.mxu0 %v707
    %v726 = vpop.f32.mrf.mxu0
    %v727 = vadd.f32 0.0, %v726
    %728 = vdwg.mxu0
    %v730 = vrot.slane %v727, 3
    %v731 = vrot.slane %v727, 4
    %v734 = vadd.f32 %v101, %v730
    %v735 = vadd.f32 %v104, %v731
    %v736 = vadd.f32 %v734, %v144
    %v737 = vadd.f32 %v735, %v144
    %v738 = vxor.u32 %v736, 2147483648
    %v739 = vxor.u32 %v737, 2147483648
    %v740 = vmul.f32 %v738, 1.442695
    %v741 = vpow.pop %v740
    %v742 = vmul.f32 %v739, 1.442695
    %v743 = vpow.pop %v742
    %v744 = vadd.f32 %v741, 1.0
    %v745 = vadd.f32 %v743, 1.0
    %v746 = vrcp.pop %v744
    %v747 = vmul.f32 %v744, %v746
    %v748 = vsub.f32 1.0, %v747
    %v749 = vmul.f32 %v746, %v748
    %v750 = vadd.f32 %v746, %v749
    %vm751 = vweird.f32 %v744
    %vm752 = vweird.f32 %v746
    %vm753 = vmor %vm751, %vm752
    %v754 = vsel %vm753, %v746, %v750
    %v755 = vand.u32 2147483647, %v744
    %vm756 = vcmp.eq.f32.partialorder %v755, 8.507059e+37
    %v757 = vand.u32 %v744, 2147483648
    %v758 = vor.u32 1.1754944e-38, %v757
    %v759 = vsel %vm756, %v758, %v754
    %v760 = vmul.f32 1.0, %v759
    %v761 = vrcp.pop %v745
    %v762 = vmul.f32 %v745, %v761
    %v763 = vsub.f32 1.0, %v762
    %v764 = vmul.f32 %v761, %v763
    %v765 = vadd.f32 %v761, %v764
    %vm766 = vweird.f32 %v745
    %vm767 = vweird.f32 %v761
    %vm768 = vmor %vm766, %vm767
    %v769 = vsel %vm768, %v761, %v765
    %v770 = vand.u32 2147483647, %v745
    %vm771 = vcmp.eq.f32.partialorder %v770, 8.507059e+37
    %v772 = vand.u32 %v745, 2147483648
    %v773 = vor.u32 1.1754944e-38, %v772
    %v774 = vsel %vm771, %v773, %v769
    %v775 = vmul.f32 1.0, %v774
    %v776 = vtanh.pop %v736
    %v777 = vtanh.pop %v737
    %v780 = vrot.slane %v686, 7
    %v781 = vrot.slane %v687, 7
    %v784 = vmul.f32 %v760, %v780
    %v785 = vmul.f32 %v775, %v781
    %788 = vrot.lane.b32.xlu0 %v776, 64
    %v789 = vpop.permute.xlu0 %788
    %790 = vrot.lane.b32.xlu0 %v777, 64
    %v791 = vpop.permute.xlu0 %790
    %v794 = vmul.f32 %v760, %v789
    %v795 = vmul.f32 %v775, %v791
    %798 = vrot.lane.b32.xlu0 %v794, 32
    %v799 = vpop.permute.xlu0 %798
    %800 = vrot.lane.b32.xlu0 %v795, 32
    %v801 = vpop.permute.xlu0 %800
    %v804 = vadd.f32 %v784, %v799
    %v805 = vadd.f32 %v785, %v801
    %v806 = vtanh.pop %v804
    %v807 = vtanh.pop %v805
    %810 = vrot.lane.b32.xlu0 %v806, 64
    %v811 = vpop.permute.xlu0 %810
    %812 = vrot.lane.b32.xlu0 %v807, 64
    %v813 = vpop.permute.xlu0 %812
    %v816 = vmul.f32 %v760, %v811
    %v817 = vmul.f32 %v775, %v813
    %v820 = vrot.slane %v816, 5
    %v821 = vrot.slane %v817, 4
    %v822 = vsel %vm233, %v821, %v820
    %823 = vrot.lane.b32.xlu0 %v822, 32
    %v824 = vpop.permute.xlu0 %823
    %v825 = vsel %vm113, %v824, 0
    %827 = vmatpush.msra.mxu0 0.0
    %828 = vmatpush.msra.mxu0 0.0
    %829 = vmatpush.msra.mxu0 0.0
    %830 = vmatpush.msra.mxu0 0.0
    %831 = vmatpush.msra.mxu0 0.0
    %832 = vmatpush.msra.mxu0 0.0
    %833 = vmatpush.msra.mxu0 0.0
    %834 = vmatpush.msra.mxu0 0.0
    %835 = vmatpush.msra.mxu0 0.0
    %836 = vmatpush.msra.mxu0 0.0
    %837 = vmatpush.msra.mxu0 0.0
    %838 = vmatpush.msra.mxu0 0.0
    %839 = vmatpush.msra.mxu0 %v109
    %840 = vmatpush.msra.mxu0 %v108
    %841 = vmatpush.msra.mxu0 %v107
    %842 = vmatpush.msra.mxu0 %v106
    %843 = vmatmul.f32.gmra.mxu0 %v825
    %v844 = vpop.f32.mrf.mxu0
    %v845 = vadd.f32 0.0, %v844
    %846 = vdwg.mxu0
    %v848 = vrot.slane %v845, 2
    %v849 = vrot.slane %v845, 3
    %v852 = vadd.f32 %v101, %v848
    %v853 = vadd.f32 %v104, %v849
    %v854 = vadd.f32 %v852, %v144
    %v855 = vadd.f32 %v853, %v144
    %v856 = vxor.u32 %v854, 2147483648
    %v857 = vxor.u32 %v855, 2147483648
    %v858 = vmul.f32 %v856, 1.442695
    %v859 = vpow.pop %v858
    %v860 = vmul.f32 %v857, 1.442695
    %v861 = vpow.pop %v860
    %v862 = vadd.f32 %v859, 1.0
    %v863 = vadd.f32 %v861, 1.0
    %v864 = vrcp.pop %v862
    %v865 = vmul.f32 %v862, %v864
    %v866 = vsub.f32 1.0, %v865
    %v867 = vmul.f32 %v864, %v866
    %v868 = vadd.f32 %v864, %v867
    %vm869 = vweird.f32 %v862
    %vm870 = vweird.f32 %v864
    %vm871 = vmor %vm869, %vm870
    %v872 = vsel %vm871, %v864, %v868
    %v873 = vand.u32 2147483647, %v862
    %vm874 = vcmp.eq.f32.partialorder %v873, 8.507059e+37
    %v875 = vand.u32 %v862, 2147483648
    %v876 = vor.u32 1.1754944e-38, %v875
    %v877 = vsel %vm874, %v876, %v872
    %v878 = vmul.f32 1.0, %v877
    %v879 = vrcp.pop %v863
    %v880 = vmul.f32 %v863, %v879
    %v881 = vsub.f32 1.0, %v880
    %v882 = vmul.f32 %v879, %v881
    %v883 = vadd.f32 %v879, %v882
    %vm884 = vweird.f32 %v863
    %vm885 = vweird.f32 %v879
    %vm886 = vmor %vm884, %vm885
    %v887 = vsel %vm886, %v879, %v883
    %v888 = vand.u32 2147483647, %v863
    %vm889 = vcmp.eq.f32.partialorder %v888, 8.507059e+37
    %v890 = vand.u32 %v863, 2147483648
    %v891 = vor.u32 1.1754944e-38, %v890
    %v892 = vsel %vm889, %v891, %v887
    %v893 = vmul.f32 1.0, %v892
    %v894 = vtanh.pop %v854
    %v895 = vtanh.pop %v855
    %v898 = vrot.slane %v804, 7
    %v899 = vrot.slane %v805, 7
    %v902 = vmul.f32 %v878, %v898
    %v903 = vmul.f32 %v893, %v899
    %906 = vrot.lane.b32.xlu0 %v894, 64
    %v907 = vpop.permute.xlu0 %906
    %908 = vrot.lane.b32.xlu0 %v895, 64
    %v909 = vpop.permute.xlu0 %908
    %v912 = vmul.f32 %v878, %v907
    %v913 = vmul.f32 %v893, %v909
    %916 = vrot.lane.b32.xlu0 %v912, 32
    %v917 = vpop.permute.xlu0 %916
    %918 = vrot.lane.b32.xlu0 %v913, 32
    %v919 = vpop.permute.xlu0 %918
    %v922 = vadd.f32 %v902, %v917
    %v923 = vadd.f32 %v903, %v919
    %v924 = vtanh.pop %v922
    %v925 = vtanh.pop %v923
    %928 = vrot.lane.b32.xlu0 %v924, 64
    %v929 = vpop.permute.xlu0 %928
    %930 = vrot.lane.b32.xlu0 %v925, 64
    %v931 = vpop.permute.xlu0 %930
    %v934 = vmul.f32 %v878, %v929
    %v935 = vmul.f32 %v893, %v931
    %v938 = vrot.slane %v934, 6
    %v939 = vrot.slane %v935, 5
    %v940 = vsel %vm233, %v939, %v938
    %941 = vrot.lane.b32.xlu0 %v940, 32
    %v942 = vpop.permute.xlu0 %941
    %v943 = vsel %vm113, %v942, 0
    %945 = vmatpush.msra.mxu0 0.0
    %946 = vmatpush.msra.mxu0 0.0
    %947 = vmatpush.msra.mxu0 0.0
    %948 = vmatpush.msra.mxu0 0.0
    %949 = vmatpush.msra.mxu0 0.0
    %950 = vmatpush.msra.mxu0 0.0
    %951 = vmatpush.msra.mxu0 0.0
    %952 = vmatpush.msra.mxu0 0.0
    %953 = vmatpush.msra.mxu0 0.0
    %954 = vmatpush.msra.mxu0 0.0
    %955 = vmatpush.msra.mxu0 0.0
    %956 = vmatpush.msra.mxu0 0.0
    %957 = vmatpush.msra.mxu0 %v109
    %958 = vmatpush.msra.mxu0 %v108
    %959 = vmatpush.msra.mxu0 %v107
    %960 = vmatpush.msra.mxu0 %v106
    %961 = vmatmul.f32.gmra.mxu0 %v943
    %v962 = vpop.f32.mrf.mxu0
    %v963 = vadd.f32 0.0, %v962
    %964 = vdwg.mxu0
    %v966 = vrot.slane %v963, 1
    %v967 = vrot.slane %v963, 2
    %v970 = vadd.f32 %v101, %v966
    %v971 = vadd.f32 %v104, %v967
    %v972 = vadd.f32 %v970, %v144
    %v973 = vadd.f32 %v971, %v144
    %v974 = vxor.u32 %v972, 2147483648
    %v975 = vxor.u32 %v973, 2147483648
    %v976 = vmul.f32 %v974, 1.442695
    %v977 = vpow.pop %v976
    %v978 = vmul.f32 %v975, 1.442695
    %v979 = vpow.pop %v978
    %v980 = vadd.f32 %v977, 1.0
    %v981 = vadd.f32 %v979, 1.0
    %v982 = vrcp.pop %v980
    %v983 = vmul.f32 %v980, %v982
    %v984 = vsub.f32 1.0, %v983
    %v985 = vmul.f32 %v982, %v984
    %v986 = vadd.f32 %v982, %v985
    %vm987 = vweird.f32 %v980
    %vm988 = vweird.f32 %v982
    %vm989 = vmor %vm987, %vm988
    %v990 = vsel %vm989, %v982, %v986
    %v991 = vand.u32 2147483647, %v980
    %vm992 = vcmp.eq.f32.partialorder %v991, 8.507059e+37
    %v993 = vand.u32 %v980, 2147483648
    %v994 = vor.u32 1.1754944e-38, %v993
    %v995 = vsel %vm992, %v994, %v990
    %v996 = vmul.f32 1.0, %v995
    %v997 = vrcp.pop %v981
    %v998 = vmul.f32 %v981, %v997
    %v999 = vsub.f32 1.0, %v998
    %v1000 = vmul.f32 %v997, %v999
    %v1001 = vadd.f32 %v997, %v1000
    %vm1002 = vweird.f32 %v981
    %vm1003 = vweird.f32 %v997
    %vm1004 = vmor %vm1002, %vm1003
    %v1005 = vsel %vm1004, %v997, %v1001
    %v1006 = vand.u32 2147483647, %v981
    %vm1007 = vcmp.eq.f32.partialorder %v1006, 8.507059e+37
    %v1008 = vand.u32 %v981, 2147483648
    %v1009 = vor.u32 1.1754944e-38, %v1008
    %v1010 = vsel %vm1007, %v1009, %v1005
    %v1011 = vmul.f32 1.0, %v1010
    %v1012 = vtanh.pop %v972
    %v1013 = vtanh.pop %v973
    %v1016 = vrot.slane %v922, 7
    %v1017 = vrot.slane %v923, 7
    %v1020 = vmul.f32 %v996, %v1016
    %v1021 = vmul.f32 %v1011, %v1017
    %1024 = vrot.lane.b32.xlu0 %v1012, 64
    %v1025 = vpop.permute.xlu0 %1024
    %1026 = vrot.lane.b32.xlu0 %v1013, 64
    %v1027 = vpop.permute.xlu0 %1026
    %v1030 = vmul.f32 %v996, %v1025
    %v1031 = vmul.f32 %v1011, %v1027
    %1034 = vrot.lane.b32.xlu0 %v1030, 32
    %v1035 = vpop.permute.xlu0 %1034
    %1036 = vrot.lane.b32.xlu0 %v1031, 32
    %v1037 = vpop.permute.xlu0 %1036
    %v1040 = vadd.f32 %v1020, %v1035
    %v1041 = vadd.f32 %v1021, %v1037
    %v1042 = vtanh.pop %v1040
    %v1043 = vtanh.pop %v1041
    %1046 = vrot.lane.b32.xlu0 %v1042, 64
    %v1047 = vpop.permute.xlu0 %1046
    %1048 = vrot.lane.b32.xlu0 %v1043, 64
    %v1049 = vpop.permute.xlu0 %1048
    %v1052 = vmul.f32 %v996, %v1047
    %v1053 = vmul.f32 %v1011, %v1049
    %v1056 = vrot.slane %v1053, 7
    %1057 = vrot.lane.b32.xlu0 %v1052, 32
    %v1058 = vpop.permute.xlu0 %1057
    %1059 = vrot.lane.b32.xlu0 %v1056, 32
    %v1060 = vpop.permute.xlu0 %1059
    %vm1063 = vcmask 261127
    %1064 = vst.msk [vmem:[#allocation2 - $0x7] sm:$0x80] %vm1063, %v1058
    %vm1065 = vcmask 253952
    %1066 = vst.msk [vmem:[#allocation2 + $0x1] sm:$0x1] %vm1065, %v1060
    %v1069 = vrot.slane %v1041, 7
    %1070 = vrot.lane.b32.xlu0 %v1040, 96
    %v1071 = vpop.permute.xlu0 %1070
    %1072 = vrot.lane.b32.xlu0 %v1069, 96
    %v1073 = vpop.permute.xlu0 %1072
    %1076 = vst.msk [vmem:[#allocation3 - $0x7] sm:$0x80] %vm1063, %v1071
    %1077 = vst.msk [vmem:[#allocation3 + $0x1] sm:$0x1] %vm1065, %v1073
    // Predicated region
    $region34: #{tpu_custom_call.1} parent=1 // pred_check
      %p1078 = pneg %p65
    $region35: #{tpu_custom_call.1} parent=1 // pred_check_branch
      %1080 = sbr.rel (%p1078) target = $region37
    $region36: #{tpu_custom_call.1} parent=1 // pred_region
      %1081 = vst.msk [vmem:[#allocation10 - $0x7] sm:$0x80] %vm1063, %v1058
      %1082 = vst.msk [vmem:[#allocation10 + $0x1] sm:$0x1] %vm1065, %v1060
    $region37: #{tpu_custom_call.1} parent=1 // pred_fallthru
      _
    // Predicated region
    $region38: #{tpu_custom_call.1} parent=1 // pred_check
      _
    $region39: #{tpu_custom_call.1} parent=1 // pred_check_branch
      %1084 = sbr.rel (0) target = $region41
    $region40: #{tpu_custom_call.1} parent=1 // pred_region
      %1086 = vsyncadd [#allocation6], 0
      %s1088 = sshll.u32 [#allocation10], 4
      %s1089 = int_to_ptr.vmem [resolvable:$true] %s1088
      %s1090 = sshll.u32 %s4, 4
      %s1091 = int_to_ptr.hbm [resolvable:$true] %s1090
      %1093 = dma.vmem_to_hbm [thread:$0]  %s1089, 32, %s1091, [#allocation6]
    $region41: #{tpu_custom_call.1} parent=1 // pred_fallthru
      _
    // Predicated region
    $region42: #{tpu_custom_call.1} parent=1 // pred_check
      _
    $region43: #{tpu_custom_call.1} parent=1 // pred_check_branch
      %1095 = sbr.rel (0) target = $region45
    $region44: #{tpu_custom_call.1} parent=1 // pred_region
      %1097 = dma.done [#allocation6], 32
    $region45: #{tpu_custom_call.1} parent=1 // pred_fallthru
      _
    %1098 = vsyncpa [#allocation5], 1
    %1099 = vsyncpa [#allocation8], 1
    %1100 = vsyncpa [#allocation6], 1

</llo_original>
